<compile_context>
chip_gen: v7x
topology: tpu7x:2x2x1
jax: 0.10.0
libtpu: 0.0.40
codegen_flags: <defaults>
</compile_context>

<pallas_src>
import functools

import jax
import jax.numpy as jnp
from jax import lax
from jax.experimental import pallas as pl
from jax.experimental.pallas import tpu as pltpu


def _leaky_relu(x, slope=0.2):
    return jnp.where(x >= 0, x, slope * x)


# --------------------------------------------------------------------------- #
# Kernel: fused 3-layer MLP (both branches), real sub-block matmuls only.
# --------------------------------------------------------------------------- #
def fused_generator_kernel(z_ref, e1_ref, w1z_ref, w2c_ref, w2t_ref,
                           w3c_ref, w3t_ref, vec_ref, codes_ref, trans_ref):
    z = z_ref[...]                               # (B, latent_dim) bf16
    vecs = vec_ref[...]                          # (8, 512) f32 packed vectors

    h2_w = w2c_ref.shape[1] + w2t_ref.shape[1]   # 512 (256 codes | 256 trans)
    b2 = vecs[0:1, :h2_w]
    gamma = vecs[1:2, :h2_w]
    beta = vecs[2:3, :h2_w]
    b3c = vecs[3:4, :codes_ref.shape[1]]
    b3t = vecs[4:5, :trans_ref.shape[1]]

    # Block 1: Linear (embedding part pre-folded into the per-row f32 bias e1)
    #          -> LeakyReLU(0.2).  No norm.
    h1 = jnp.dot(z, w1z_ref[...], preferred_element_type=jnp.float32) + e1_ref[...]
    h1 = _leaky_relu(h1).astype(jnp.bfloat16)    # (B, 256): [codes 128 | trans 128]

    # Block 2: two real-sub-block Linears -> one (B, 512) slab (128-aligned
    #          lane concat, no relayout) -> BatchNorm1d(eps=0.8, biased batch
    #          stats, training mode) -> LeakyReLU(0.2).
    kc = w2c_ref.shape[0]                        # 128
    h2c = jnp.dot(h1[:, :kc], w2c_ref[...], preferred_element_type=jnp.float32)
    h2t = jnp.dot(h1[:, kc:], w2t_ref[...], preferred_element_type=jnp.float32)
    h2 = jnp.concatenate([h2c, h2t], axis=-1) + b2          # (B, 512)

    mean = jnp.mean(h2, axis=0, keepdims=True)
    var = jnp.mean(h2 * h2, axis=0, keepdims=True) - mean * mean
    scale = gamma * lax.rsqrt(var + 0.8)
    shift = beta - mean * scale
    h2 = _leaky_relu(h2 * scale + shift).astype(jnp.bfloat16)

    # Block 3: final per-branch Linears.  Sigmoid only on the transformation
    # lanes; codes keep raw logits (softmax over the feature axis is wrapper-side).
    kh = w3c_ref.shape[0]                        # 256
    y_c = jnp.dot(h2[:, :kh], w3c_ref[...], preferred_element_type=jnp.float32) + b3c
    y_t = jnp.dot(h2[:, kh:], w3t_ref[...], preferred_element_type=jnp.float32) + b3t
    codes_ref[...] = y_c
    trans_ref[...] = jax.nn.sigmoid(y_t)


# --------------------------------------------------------------------------- #
# Wrapper (single jit: gather + pallas_call + softmax/reshape/concat fuse).
# --------------------------------------------------------------------------- #
@functools.partial(jax.jit,
                   static_argnames=("feature_dim", "transformation_dim", "seq_length"))
def generator_forward(z, labels, packed, *, feature_dim, transformation_dim,
                      seq_length):
    B = z.shape[0]
    n_codes = feature_dim * seq_length
    n_trans = transformation_dim * seq_length

    z_bf16 = z.astype(jnp.bfloat16)
    # per-class layer-1 bias rows (replaces embedding lookup + concat + emb matmul)
    e1_rows = jnp.take(packed["e1"], labels, axis=0)        # (B, 256) f32

    args = (z_bf16, e1_rows, packed["w1z"], packed["w2c"], packed["w2t"],
            packed["w3c"], packed["w3t"], packed["vecs"])
    codes_raw, trans_sig = pl.pallas_call(
        fused_generator_kernel,
        out_shape=(jax.ShapeDtypeStruct((B, n_codes), jnp.float32),
                   jax.ShapeDtypeStruct((B, n_trans), jnp.float32)),
        in_specs=[pl.BlockSpec(memory_space=pltpu.MemorySpace.VMEM)] * len(args),
        out_specs=(pl.BlockSpec(memory_space=pltpu.MemorySpace.VMEM),
                   pl.BlockSpec(memory_space=pltpu.MemorySpace.VMEM)),
    )(*args)

    # glue (layout plumbing): softmax over the feature axis, reshape, concat.
    codes = jax.nn.softmax(codes_raw.reshape(B, feature_dim, seq_length), axis=1)
    trans = trans_sig.reshape(B, transformation_dim, seq_length)
    img = jnp.concatenate([codes, trans], axis=1)
    return img.reshape(B, 1, feature_dim + transformation_dim, seq_length)


# --------------------------------------------------------------------------- #
# Parameter init (PyTorch-like, per branch) and host-side fusion/packing.
# --------------------------------------------------------------------------- #
def init_params(key, n_classes, latent_dim, feature_dim, transformation_dim, seq_length):
    """Deterministic synthetic init.  Linear weights stored as (in, out)."""
    in_dim = latent_dim + n_classes

    def lin(k, fan_in, fan_out):
        bound = 1.0 / (fan_in ** 0.5)
        kw, kb = jax.random.split(k)
        w = jax.random.uniform(kw, (fan_in, fan_out), jnp.float32, -bound, bound)
        b = jax.random.uniform(kb, (1, fan_out), jnp.float32, -bound, bound)
        return w, b

    ks = jax.random.split(key, 8)
    params = {}
    params["label_emb"] = jax.random.normal(ks[0], (n_classes, n_classes), jnp.float32)

    # codes_model
    params["c_w1"], params["c_b1"] = lin(ks[1], in_dim, 128)
    params["c_w2"], params["c_b2"] = lin(ks[2], 128, 256)
    params["c_gamma"] = jnp.ones((1, 256), jnp.float32)
    params["c_beta"] = jnp.zeros((1, 256), jnp.float32)
    params["c_w3"], params["c_b3"] = lin(ks[3], 256, feature_dim * seq_length)

    # transformation_model
    params["t_w1"], params["t_b1"] = lin(ks[4], in_dim, 128)
    params["t_w2"], params["t_b2"] = lin(ks[5], 128, 256)
    params["t_gamma"] = jnp.ones((1, 256), jnp.float32)
    params["t_beta"] = jnp.zeros((1, 256), jnp.float32)
    params["t_w3"], params["t_b3"] = lin(ks[6], 256, transformation_dim * seq_length)
    return params


def pack_params(params, *, n_classes, feature_dim, transformation_dim, seq_length):
    """Fuse the two branches for the kernel — no zero blocks are materialized.

    Done once on the host:
      * layer-1 weights column-concatenated; the embedding rows are folded into
        a per-class f32 bias table e1 = label_emb @ W1[:n_classes] + b1.
      * layer-2/3 kept as their real per-branch sub-blocks (bf16).
      * all remaining bias / gamma / beta vectors packed into one (8, 512) f32
        array (single DMA).
    """
    n_codes = feature_dim * seq_length          # 64
    n_trans = transformation_dim * seq_length   # 32

    # layer 1: column concat -> (in_dim, 256); split emb rows / z rows.
    w1 = jnp.concatenate([params["c_w1"], params["t_w1"]], axis=1)
    b1 = jnp.concatenate([params["c_b1"], params["t_b1"]], axis=1)         # (1, 256)
    e1 = params["label_emb"] @ w1[:n_classes, :] + b1                      # (n_classes, 256)
    w1z = w1[n_classes:, :]                                                # (latent_dim, 256)

    # layer 2 / BN vectors
    b2 = jnp.concatenate([params["c_b2"], params["t_b2"]], axis=1)         # (1, 512)
    gamma = jnp.concatenate([params["c_gamma"], params["t_gamma"]], axis=1)
    beta = jnp.concatenate([params["c_beta"], params["t_beta"]], axis=1)

    # pack all (1, N) vectors into one (8, 512) f32 array (one DMA)
    vecs = jnp.zeros((8, 512), jnp.float32)
    vecs = vecs.at[0, :].set(b2[0])
    vecs = vecs.at[1, :].set(gamma[0])
    vecs = vecs.at[2, :].set(beta[0])
    vecs = vecs.at[3, :n_codes].set(params["c_b3"][0])
    vecs = vecs.at[4, :n_trans].set(params["t_b3"][0])

    return {
        "e1": e1,                                        # f32 (exact emb @ W1 fold)
        "w1z": w1z.astype(jnp.bfloat16),                 # (latent_dim, 256)
        "w2c": params["c_w2"].astype(jnp.bfloat16),      # (128, 256)
        "w2t": params["t_w2"].astype(jnp.bfloat16),      # (128, 256)
        "w3c": params["c_w3"].astype(jnp.bfloat16),      # (256, n_codes)
        "w3t": params["t_w3"].astype(jnp.bfloat16),      # (256, n_trans)
        "vecs": vecs,                                    # (8, 512) f32
    }


# --------------------------------------------------------------------------- #
# Pure-JAX unfused f32 reference (mirrors the PyTorch forward) for sanity check.
# --------------------------------------------------------------------------- #
def reference_forward(z, labels, params, *, feature_dim, transformation_dim, seq_length):
    emb = jnp.take(params["label_emb"], labels, axis=0)
    x = jnp.concatenate([emb, z], axis=-1)
    B = z.shape[0]

    def branch(w1, b1, w2, b2, g, bt, w3, b3):
        h = _leaky_relu(x @ w1 + b1)
        h = h @ w2 + b2
        mean = jnp.mean(h, axis=0, keepdims=True)
        var = jnp.mean((h - mean) ** 2, axis=0, keepdims=True)   # biased
        h = _leaky_relu((h - mean) * lax.rsqrt(var + 0.8) * g + bt)
        return h @ w3 + b3

    codes = branch(params["c_w1"], params["c_b1"], params["c_w2"], params["c_b2"],
                   params["c_gamma"], params["c_beta"], params["c_w3"], params["c_b3"])
    codes = jax.nn.softmax(codes.reshape(B, feature_dim, seq_length), axis=1)
    trans = branch(params["t_w1"], params["t_b1"], params["t_w2"], params["t_b2"],
                   params["t_gamma"], params["t_beta"], params["t_w3"], params["t_b3"])
    trans = jax.nn.sigmoid(trans).reshape(B, transformation_dim, seq_length)
    return jnp.concatenate([codes, trans], axis=1).reshape(
        B, 1, feature_dim + transformation_dim, seq_length)


if __name__ == "__main__":
    n_classes = 3
    latent_dim = 16
    feature_dim = 8
    transformation_dim = 4
    seq_length = 8
    B = 4

    key = jax.random.PRNGKey(0)
    kp, kz, kl = jax.random.split(key, 3)
    params = init_params(kp, n_classes, latent_dim, feature_dim,
                         transformation_dim, seq_length)
    packed = pack_params(params, n_classes=n_classes, feature_dim=feature_dim,
                         transformation_dim=transformation_dim,
                         seq_length=seq_length)

    z = jax.random.normal(kz, (B, latent_dim), jnp.float32)
    labels = jax.random.randint(kl, (B,), 0, n_classes)

    img = generator_forward(z, labels, packed,
                            feature_dim=feature_dim,
                            transformation_dim=transformation_dim,
                            seq_length=seq_length)
    jax.block_until_ready(img)

    D = feature_dim + transformation_dim
    assert img.shape == (B, 1, D, seq_length), img.shape
    # softmax rows of the codes half sum to 1 over the feature axis
    assert bool(jnp.allclose(jnp.sum(img[:, 0, :feature_dim, :], axis=1), 1.0, atol=1e-5))
    # transformation half lies in (0, 1) after sigmoid
    t = img[:, 0, feature_dim:, :]
    assert bool(jnp.all((t > 0.0) & (t < 1.0)))
    # coarse cross-check against the unfused f32 reference (kernel matmuls are bf16)
    ref = reference_forward(z, labels, params,
                            feature_dim=feature_dim,
                            transformation_dim=transformation_dim,
                            seq_length=seq_length)
    assert bool(jnp.allclose(img, ref, atol=1e-1)), float(jnp.max(jnp.abs(img - ref)))
    print("KERNEL_OK")
</pallas_src>

<mosaic_0001>
module attributes {stable_mosaic.version = 11 : i64} {
  func.func @fused_generator_kernel(%arg0: memref<4x16xbf16, #tpu.memory_space<vmem>>, %arg1: memref<4x256xf32, #tpu.memory_space<vmem>>, %arg2: memref<16x256xbf16, #tpu.memory_space<vmem>>, %arg3: memref<128x256xbf16, #tpu.memory_space<vmem>>, %arg4: memref<128x256xbf16, #tpu.memory_space<vmem>>, %arg5: memref<256x64xbf16, #tpu.memory_space<vmem>>, %arg6: memref<256x32xbf16, #tpu.memory_space<vmem>>, %arg7: memref<8x512xf32, #tpu.memory_space<vmem>>, %arg8: memref<4x64xf32, #tpu.memory_space<vmem>>, %arg9: memref<4x32xf32, #tpu.memory_space<vmem>>) attributes {dimension_semantics = [], scalar_prefetch = 0 : i64, scratch_operands = 0 : i64, tpu.core_type = #tpu.core_type<tc>} {
    %c0 = arith.constant 0 : index
    %c0_0 = arith.constant 0 : index
    %0 = vector.load %arg0[%c0, %c0_0] : memref<4x16xbf16, #tpu.memory_space<vmem>>, vector<4x16xbf16>
    %c0_1 = arith.constant 0 : index
    %c0_2 = arith.constant 0 : index
    %1 = vector.load %arg7[%c0_1, %c0_2] : memref<8x512xf32, #tpu.memory_space<vmem>>, vector<8x512xf32>
    %2 = vector.extract_strided_slice %1 {offsets = [0, 0], sizes = [1, 512], strides = [1, 1]} : vector<8x512xf32> to vector<1x512xf32>
    %3 = vector.extract_strided_slice %1 {offsets = [1, 0], sizes = [1, 512], strides = [1, 1]} : vector<8x512xf32> to vector<1x512xf32>
    %4 = vector.extract_strided_slice %1 {offsets = [2, 0], sizes = [1, 512], strides = [1, 1]} : vector<8x512xf32> to vector<1x512xf32>
    %5 = vector.extract_strided_slice %1 {offsets = [3, 0], sizes = [1, 64], strides = [1, 1]} : vector<8x512xf32> to vector<1x64xf32>
    %6 = vector.extract_strided_slice %1 {offsets = [4, 0], sizes = [1, 32], strides = [1, 1]} : vector<8x512xf32> to vector<1x32xf32>
    %c0_3 = arith.constant 0 : index
    %c0_4 = arith.constant 0 : index
    %7 = vector.load %arg2[%c0_3, %c0_4] : memref<16x256xbf16, #tpu.memory_space<vmem>>, vector<16x256xbf16>
    %cst = arith.constant dense<0.000000e+00> : vector<4x256xf32>
    %8 = tpu.matmul %0, %7, %cst {dimension_numbers = #tpu.dot_dimension_numbers<[1], [0], [0], [1], [0, 0, 1, 1], [], []>} : vector<4x16xbf16>, vector<16x256xbf16>, vector<4x256xf32> -> vector<4x256xf32>
    %c0_5 = arith.constant 0 : index
    %c0_6 = arith.constant 0 : index
    %9 = vector.load %arg1[%c0_5, %c0_6] : memref<4x256xf32, #tpu.memory_space<vmem>>, vector<4x256xf32>
    %10 = arith.addf %8, %9 : vector<4x256xf32>
    %cst_7 = arith.constant 0.000000e+00 : f32
    %11 = vector.broadcast %cst_7 : f32 to vector<4x256xf32>
    %12 = arith.cmpf oge, %10, %11 : vector<4x256xf32>
    %cst_8 = arith.constant 2.000000e-01 : f32
    %13 = vector.broadcast %cst_8 : f32 to vector<4x256xf32>
    %14 = arith.mulf %13, %10 : vector<4x256xf32>
    %15 = arith.select %12, %10, %14 : vector<4x256xi1>, vector<4x256xf32>
    %16 = arith.truncf %15 : vector<4x256xf32> to vector<4x256xbf16>
    %17 = vector.extract_strided_slice %16 {offsets = [0, 0], sizes = [4, 128], strides = [1, 1]} : vector<4x256xbf16> to vector<4x128xbf16>
    %c0_9 = arith.constant 0 : index
    %c0_10 = arith.constant 0 : index
    %18 = vector.load %arg3[%c0_9, %c0_10] : memref<128x256xbf16, #tpu.memory_space<vmem>>, vector<128x256xbf16>
    %cst_11 = arith.constant dense<0.000000e+00> : vector<4x256xf32>
    %19 = tpu.matmul %17, %18, %cst_11 {dimension_numbers = #tpu.dot_dimension_numbers<[1], [0], [0], [1], [0, 0, 1, 1], [], []>} : vector<4x128xbf16>, vector<128x256xbf16>, vector<4x256xf32> -> vector<4x256xf32>
    %20 = vector.extract_strided_slice %16 {offsets = [0, 128], sizes = [4, 128], strides = [1, 1]} : vector<4x256xbf16> to vector<4x128xbf16>
    %c0_12 = arith.constant 0 : index
    %c0_13 = arith.constant 0 : index
    %21 = vector.load %arg4[%c0_12, %c0_13] : memref<128x256xbf16, #tpu.memory_space<vmem>>, vector<128x256xbf16>
    %cst_14 = arith.constant dense<0.000000e+00> : vector<4x256xf32>
    %22 = tpu.matmul %20, %21, %cst_14 {dimension_numbers = #tpu.dot_dimension_numbers<[1], [0], [0], [1], [0, 0, 1, 1], [], []>} : vector<4x128xbf16>, vector<128x256xbf16>, vector<4x256xf32> -> vector<4x256xf32>
    %23 = tpu.concatenate %19, %22 in 1 : vector<4x256xf32>, vector<4x256xf32> -> vector<4x512xf32>
    %24 = vector.broadcast %2 : vector<1x512xf32> to vector<4x512xf32>
    %25 = arith.addf %23, %24 : vector<4x512xf32>
    %cst_15 = arith.constant dense<0.000000e+00> : vector<512xf32>
    %26 = vector.multi_reduction <add>, %25, %cst_15 [0] : vector<4x512xf32> to vector<512xf32>
    %27 = vector.shape_cast %26 : vector<512xf32> to vector<1x512xf32>
    %cst_16 = arith.constant 4.000000e+00 : f32
    %28 = vector.broadcast %cst_16 : f32 to vector<1x512xf32>
    %29 = arith.divf %27, %28 : vector<1x512xf32>
    %30 = arith.mulf %25, %25 : vector<4x512xf32>
    %cst_17 = arith.constant dense<0.000000e+00> : vector<512xf32>
    %31 = vector.multi_reduction <add>, %30, %cst_17 [0] : vector<4x512xf32> to vector<512xf32>
    %32 = vector.shape_cast %31 : vector<512xf32> to vector<1x512xf32>
    %cst_18 = arith.constant 4.000000e+00 : f32
    %33 = vector.broadcast %cst_18 : f32 to vector<1x512xf32>
    %34 = arith.divf %32, %33 : vector<1x512xf32>
    %35 = arith.mulf %29, %29 : vector<1x512xf32>
    %36 = arith.subf %34, %35 : vector<1x512xf32>
    %cst_19 = arith.constant 8.000000e-01 : f32
    %37 = vector.broadcast %cst_19 : f32 to vector<1x512xf32>
    %38 = arith.addf %36, %37 : vector<1x512xf32>
    %39 = math.rsqrt %38 : vector<1x512xf32>
    %40 = arith.mulf %3, %39 : vector<1x512xf32>
    %41 = arith.mulf %29, %40 : vector<1x512xf32>
    %42 = arith.subf %4, %41 : vector<1x512xf32>
    %43 = vector.broadcast %40 : vector<1x512xf32> to vector<4x512xf32>
    %44 = arith.mulf %25, %43 : vector<4x512xf32>
    %45 = vector.broadcast %42 : vector<1x512xf32> to vector<4x512xf32>
    %46 = arith.addf %44, %45 : vector<4x512xf32>
    %cst_20 = arith.constant 0.000000e+00 : f32
    %47 = vector.broadcast %cst_20 : f32 to vector<4x512xf32>
    %48 = arith.cmpf oge, %46, %47 : vector<4x512xf32>
    %cst_21 = arith.constant 2.000000e-01 : f32
    %49 = vector.broadcast %cst_21 : f32 to vector<4x512xf32>
    %50 = arith.mulf %49, %46 : vector<4x512xf32>
    %51 = arith.select %48, %46, %50 : vector<4x512xi1>, vector<4x512xf32>
    %52 = arith.truncf %51 : vector<4x512xf32> to vector<4x512xbf16>
    %53 = vector.extract_strided_slice %52 {offsets = [0, 0], sizes = [4, 256], strides = [1, 1]} : vector<4x512xbf16> to vector<4x256xbf16>
    %c0_22 = arith.constant 0 : index
    %c0_23 = arith.constant 0 : index
    %54 = vector.load %arg5[%c0_22, %c0_23] : memref<256x64xbf16, #tpu.memory_space<vmem>>, vector<256x64xbf16>
    %cst_24 = arith.constant dense<0.000000e+00> : vector<4x64xf32>
    %55 = tpu.matmul %53, %54, %cst_24 {dimension_numbers = #tpu.dot_dimension_numbers<[1], [0], [0], [1], [0, 0, 1, 1], [], []>} : vector<4x256xbf16>, vector<256x64xbf16>, vector<4x64xf32> -> vector<4x64xf32>
    %56 = vector.broadcast %5 : vector<1x64xf32> to vector<4x64xf32>
    %57 = arith.addf %55, %56 : vector<4x64xf32>
    %58 = vector.extract_strided_slice %52 {offsets = [0, 256], sizes = [4, 256], strides = [1, 1]} : vector<4x512xbf16> to vector<4x256xbf16>
    %c0_25 = arith.constant 0 : index
    %c0_26 = arith.constant 0 : index
    %59 = vector.load %arg6[%c0_25, %c0_26] : memref<256x32xbf16, #tpu.memory_space<vmem>>, vector<256x32xbf16>
    %cst_27 = arith.constant dense<0.000000e+00> : vector<4x32xf32>
    %60 = tpu.matmul %58, %59, %cst_27 {dimension_numbers = #tpu.dot_dimension_numbers<[1], [0], [0], [1], [0, 0, 1, 1], [], []>} : vector<4x256xbf16>, vector<256x32xbf16>, vector<4x32xf32> -> vector<4x32xf32>
    %61 = vector.broadcast %6 : vector<1x32xf32> to vector<4x32xf32>
    %62 = arith.addf %60, %61 : vector<4x32xf32>
    %c0_28 = arith.constant 0 : index
    %c0_29 = arith.constant 0 : index
    %63 = vector.load %arg8[%c0_28, %c0_29] : memref<4x64xf32, #tpu.memory_space<vmem>>, vector<4x64xf32>
    tpu.vector_store %arg8[%c0_28, %c0_29], %57 {strides = array<i32>} : memref<4x64xf32, #tpu.memory_space<vmem>>, vector<4x64xf32>,
    %64 = arith.negf %62 : vector<4x32xf32>
    %65 = math.exp %64 : vector<4x32xf32>
    %cst_30 = arith.constant 1.000000e+00 : f32
    %66 = vector.broadcast %cst_30 : f32 to vector<4x32xf32>
    %67 = arith.addf %66, %65 : vector<4x32xf32>
    %68 = arith.divf %66, %67 : vector<4x32xf32>
    %c0_31 = arith.constant 0 : index
    %c0_32 = arith.constant 0 : index
    %69 = vector.load %arg9[%c0_31, %c0_32] : memref<4x32xf32, #tpu.memory_space<vmem>>, vector<4x32xf32>
    tpu.vector_store %arg9[%c0_31, %c0_32], %68 {strides = array<i32>} : memref<4x32xf32, #tpu.memory_space<vmem>>, vector<4x32xf32>,
    return
  }
}

</mosaic_0001>

<llo_original>
// kernel: generator_forward.1
$region0: #{generator_forward.1}
  #allocation0 [shape = 'u32[]', space=smem, size = 0x4, offset = 0x4, fixed_abs, tag = 'smem constant byte address 0x4 - core index']
  #allocation1 [shape = 'u32[144,128]{1,0:T(1,128)}', space=vmem, size = 0x12000, scoped, tag = 'internal scratch']
  %s0 = inlined_call_operand.vmem [shape: bf16[4,16], index: 0, kind: input, shape index: {}]
  %s1 = inlined_call_operand.vmem [shape: f32[4,256], index: 1, kind: input, shape index: {}]
  %s2 = inlined_call_operand.vmem [shape: bf16[16,256], index: 2, kind: input, shape index: {}]
  %s3 = inlined_call_operand.vmem [shape: bf16[128,256], index: 3, kind: input, shape index: {}]
  %s4 = inlined_call_operand.vmem [shape: bf16[128,256], index: 4, kind: input, shape index: {}]
  %s5 = inlined_call_operand.vmem [shape: bf16[256,64], index: 5, kind: input, shape index: {}]
  %s6 = inlined_call_operand.vmem [shape: bf16[256,32], index: 6, kind: input, shape index: {}]
  %s7 = inlined_call_operand.vmem [shape: f32[8,512], index: 7, kind: input, shape index: {}]
  %s8 = inlined_call_operand.vmem [shape: f32[4,64], index: 8, kind: output, shape index: {0}]
  %s9 = inlined_call_operand.vmem [shape: f32[4,32], index: 9, kind: output, shape index: {1}]
  %10 = xla_tuple %s8, %s9
  %s11 = sld [smem:[#allocation0]]
  $region50: #{generator_forward.1} parent=0
    _
  %s13 = ssub.s32 1, %s11
  %s14 = scalar_select 0, %s13, %s11
  // Predicated region
  $region2: #{generator_forward.1} parent=0 // pred_check
    _
  $region3: #{generator_forward.1} parent=0 // pred_check_branch
    %16 = sbr.rel (0) target = $region5
  $region4: #{generator_forward.1} parent=0 // pred_region
    _
  $region5: #{generator_forward.1} parent=0 // pred_fallthru
    _
  // Predicated region
  $region6: #{generator_forward.1} parent=0 // pred_check
    _
  $region7: #{generator_forward.1} parent=0 // pred_check_branch
    %18 = sbr.rel (0) target = $region9
  $region8: #{generator_forward.1} parent=0 // pred_region
    _
  $region9: #{generator_forward.1} parent=0 // pred_fallthru
    _
  // Predicated region
  $region10: #{generator_forward.1} parent=0 // pred_check
    _
  $region11: #{generator_forward.1} parent=0 // pred_check_branch
    %20 = sbr.rel (0) target = $region13
  $region12: #{generator_forward.1} parent=0 // pred_region
    _
  $region13: #{generator_forward.1} parent=0 // pred_fallthru
    _
  // Predicated region
  $region14: #{generator_forward.1} parent=0 // pred_check
    _
  $region15: #{generator_forward.1} parent=0 // pred_check_branch
    %22 = sbr.rel (0) target = $region17
  $region16: #{generator_forward.1} parent=0 // pred_region
    _
  $region17: #{generator_forward.1} parent=0 // pred_fallthru
    _
  // Predicated region
  $region18: #{generator_forward.1} parent=0 // pred_check
    _
  $region19: #{generator_forward.1} parent=0 // pred_check_branch
    %24 = sbr.rel (0) target = $region21
  $region20: #{generator_forward.1} parent=0 // pred_region
    _
  $region21: #{generator_forward.1} parent=0 // pred_fallthru
    _
  // Predicated region
  $region22: #{generator_forward.1} parent=0 // pred_check
    _
  $region23: #{generator_forward.1} parent=0 // pred_check_branch
    %26 = sbr.rel (0) target = $region25
  $region24: #{generator_forward.1} parent=0 // pred_region
    _
  $region25: #{generator_forward.1} parent=0 // pred_fallthru
    _
  // Predicated region
  $region26: #{generator_forward.1} parent=0 // pred_check
    _
  $region27: #{generator_forward.1} parent=0 // pred_check_branch
    %28 = sbr.rel (0) target = $region29
  $region28: #{generator_forward.1} parent=0 // pred_region
    _
  $region29: #{generator_forward.1} parent=0 // pred_fallthru
    _
  // Predicated region
  $region30: #{generator_forward.1} parent=0 // pred_check
    _
  $region31: #{generator_forward.1} parent=0 // pred_check_branch
    %30 = sbr.rel (0) target = $region33
  $region32: #{generator_forward.1} parent=0 // pred_region
    _
  $region33: #{generator_forward.1} parent=0 // pred_fallthru
    _
  %v32 = vld [vmem:[%s0] sm:$0x3]
  %v33 = vld [vmem:[%s7] sm:$0xff]
  %v34 = vld [vmem:[%s7 + $0x8] sm:$0xff]
  %v35 = vld [vmem:[%s7 + $0x10] sm:$0xff]
  %v36 = vld [vmem:[%s7 + $0x18] sm:$0xff]
  %v37 = vld [vmem:[%s2] sm:$0xff]
  %v38 = vld [vmem:[%s2 + $0x8] sm:$0xff]
  %v39 = vld [vmem:[%s1] sm:$0xff]
  %v42 = vunpack.c.l.b16 %v37
  %v43 = vunpack.c.h.b16 %v37
  %v44 = vunpack.c.l.b16 %v38
  %v45 = vunpack.c.h.b16 %v38
  %v46 = vpack.c.b16 %v44, %v42
  %v47 = vpack.c.b16 %v45, %v43
  %v51 = vcombine.high %v39, %v39
  %vm53 = vcmask 130048
  %v55 = vsel %vm53, %v32, 0
  %57 = vmatprep.subr.bf16.mxu0 %v47
  %58 = vmatpush1.bf16.msra.mxu0 %v46
  %59 = vmatprep.subr.bf16.mxu0 0
  %60 = vmatpush1.bf16.msra.mxu0 0
  %61 = vmatprep.subr.bf16.mxu0 0
  %62 = vmatpush1.bf16.msra.mxu0 0
  %63 = vmatprep.subr.bf16.mxu0 0
  %64 = vmatpush1.bf16.msra.mxu0 0
  %65 = vmatprep.subr.bf16.mxu0 0
  %66 = vmatpush1.bf16.msra.mxu0 0
  %67 = vmatprep.subr.bf16.mxu0 0
  %68 = vmatpush1.bf16.msra.mxu0 0
  %69 = vmatprep.subr.bf16.mxu0 0
  %70 = vmatpush1.bf16.msra.mxu0 0
  %71 = vmatprep.subr.bf16.mxu0 0
  %72 = vmatpush1.bf16.msra.mxu0 0
  %73 = vmatprep.subr.bf16.mxu0 0
  %74 = vmatpush1.bf16.msra.mxu0 0
  %75 = vmatprep.subr.bf16.mxu0 0
  %76 = vmatpush1.bf16.msra.mxu0 0
  %77 = vmatprep.subr.bf16.mxu0 0
  %78 = vmatpush1.bf16.msra.mxu0 0
  %79 = vmatprep.subr.bf16.mxu0 0
  %80 = vmatpush1.bf16.msra.mxu0 0
  %81 = vmatprep.subr.bf16.mxu0 0
  %82 = vmatpush1.bf16.msra.mxu0 0
  %83 = vmatprep.subr.bf16.mxu0 0
  %84 = vmatpush1.bf16.msra.mxu0 0
  %85 = vmatprep.subr.bf16.mxu0 0
  %86 = vmatpush1.bf16.msra.mxu0 0
  %87 = vmatprep.subr.bf16.mxu0 0
  %88 = vmatpush1.bf16.msra.mxu0 0
  %89 = vmatprep.mubr.bf16.mxu0 0
  %90 = vmatmul.mubr.bf16.gmra.mrb[0].mxu0 %v55
  %v91 = vpop.f32.mrb[0].mxu0
  %v92 = vadd.f32 %v39, %v91
  %v93 = vpop.f32.mrb[0].mxu0
  %v94 = vadd.f32 %v51, %v93
  %v95 = vpop.f32.mrb[0].mxu0
  %v96 = vpop.f32.mrb[0].mxu0
  %97 = vdwg.mxu0
  %vm98 = vcmp.ge.f32.partialorder %v92, 0.0
  %vm99 = vcmp.ge.f32.partialorder %v94, 0.0
  %v100 = vmul.f32 %v92, 0.2
  %v101 = vmul.f32 %v94, 0.2
  %v102 = vsel %vm98, %v92, %v100
  %v103 = vsel %vm99, %v94, %v101
  %v104 = vpack.c.bf16 %v102, %v102
  %v105 = vpack.c.bf16 %v103, %v103
  %v106 = vld [vmem:[%s3] sm:$0xff]
  %v107 = vld [vmem:[%s3 + $0x8] sm:$0xff]
  %v108 = vld [vmem:[%s3 + $0x10] sm:$0xff]
  %v109 = vld [vmem:[%s3 + $0x18] sm:$0xff]
  %v110 = vld [vmem:[%s3 + $0x20] sm:$0xff]
  %v111 = vld [vmem:[%s3 + $0x28] sm:$0xff]
  %v112 = vld [vmem:[%s3 + $0x30] sm:$0xff]
  %v113 = vld [vmem:[%s3 + $0x38] sm:$0xff]
  %v114 = vld [vmem:[%s3 + $0x40] sm:$0xff]
  %v115 = vld [vmem:[%s3 + $0x48] sm:$0xff]
  %v116 = vld [vmem:[%s3 + $0x50] sm:$0xff]
  %v117 = vld [vmem:[%s3 + $0x58] sm:$0xff]
  %v118 = vld [vmem:[%s3 + $0x60] sm:$0xff]
  %v119 = vld [vmem:[%s3 + $0x68] sm:$0xff]
  %v120 = vld [vmem:[%s3 + $0x70] sm:$0xff]
  %v121 = vld [vmem:[%s3 + $0x78] sm:$0xff]
  %v138 = vunpack.c.l.b16 %v106
  %v139 = vunpack.c.h.b16 %v106
  %v140 = vunpack.c.l.b16 %v107
  %v141 = vunpack.c.h.b16 %v107
  %v142 = vunpack.c.l.b16 %v108
  %v143 = vunpack.c.h.b16 %v108
  %v144 = vunpack.c.l.b16 %v109
  %v145 = vunpack.c.h.b16 %v109
  %v146 = vunpack.c.l.b16 %v110
  %v147 = vunpack.c.h.b16 %v110
  %v148 = vunpack.c.l.b16 %v111
  %v149 = vunpack.c.h.b16 %v111
  %v150 = vunpack.c.l.b16 %v112
  %v151 = vunpack.c.h.b16 %v112
  %v152 = vunpack.c.l.b16 %v113
  %v153 = vunpack.c.h.b16 %v113
  %v154 = vunpack.c.l.b16 %v114
  %v155 = vunpack.c.h.b16 %v114
  %v156 = vunpack.c.l.b16 %v115
  %v157 = vunpack.c.h.b16 %v115
  %v158 = vunpack.c.l.b16 %v116
  %v159 = vunpack.c.h.b16 %v116
  %v160 = vunpack.c.l.b16 %v117
  %v161 = vunpack.c.h.b16 %v117
  %v162 = vunpack.c.l.b16 %v118
  %v163 = vunpack.c.h.b16 %v118
  %v164 = vunpack.c.l.b16 %v119
  %v165 = vunpack.c.h.b16 %v119
  %v166 = vunpack.c.l.b16 %v120
  %v167 = vunpack.c.h.b16 %v120
  %v168 = vunpack.c.l.b16 %v121
  %v169 = vunpack.c.h.b16 %v121
  %v170 = vpack.c.b16 %v140, %v138
  %v171 = vpack.c.b16 %v141, %v139
  %v172 = vpack.c.b16 %v144, %v142
  %v173 = vpack.c.b16 %v145, %v143
  %v174 = vpack.c.b16 %v148, %v146
  %v175 = vpack.c.b16 %v149, %v147
  %v176 = vpack.c.b16 %v152, %v150
  %v177 = vpack.c.b16 %v153, %v151
  %v178 = vpack.c.b16 %v156, %v154
  %v179 = vpack.c.b16 %v157, %v155
  %v180 = vpack.c.b16 %v160, %v158
  %v181 = vpack.c.b16 %v161, %v159
  %v182 = vpack.c.b16 %v164, %v162
  %v183 = vpack.c.b16 %v165, %v163
  %v184 = vpack.c.b16 %v168, %v166
  %v185 = vpack.c.b16 %v169, %v167
  %202 = vmatprep.subr.bf16.mxu0 %v171
  %203 = vmatpush1.bf16.msra.mxu0 %v170
  %204 = vmatprep.subr.bf16.mxu0 %v173
  %205 = vmatpush1.bf16.msra.mxu0 %v172
  %206 = vmatprep.subr.bf16.mxu0 %v175
  %207 = vmatpush1.bf16.msra.mxu0 %v174
  %208 = vmatprep.subr.bf16.mxu0 %v177
  %209 = vmatpush1.bf16.msra.mxu0 %v176
  %210 = vmatprep.subr.bf16.mxu0 %v179
  %211 = vmatpush1.bf16.msra.mxu0 %v178
  %212 = vmatprep.subr.bf16.mxu0 %v181
  %213 = vmatpush1.bf16.msra.mxu0 %v180
  %214 = vmatprep.subr.bf16.mxu0 %v183
  %215 = vmatpush1.bf16.msra.mxu0 %v182
  %216 = vmatprep.subr.bf16.mxu0 %v185
  %217 = vmatpush1.bf16.msra.mxu0 %v184
  %218 = vmatprep.subr.bf16.mxu0 0
  %219 = vmatpush1.bf16.msra.mxu0 0
  %220 = vmatprep.subr.bf16.mxu0 0
  %221 = vmatpush1.bf16.msra.mxu0 0
  %222 = vmatprep.subr.bf16.mxu0 0
  %223 = vmatpush1.bf16.msra.mxu0 0
  %224 = vmatprep.subr.bf16.mxu0 0
  %225 = vmatpush1.bf16.msra.mxu0 0
  %226 = vmatprep.subr.bf16.mxu0 0
  %227 = vmatpush1.bf16.msra.mxu0 0
  %228 = vmatprep.subr.bf16.mxu0 0
  %229 = vmatpush1.bf16.msra.mxu0 0
  %230 = vmatprep.subr.bf16.mxu0 0
  %231 = vmatpush1.bf16.msra.mxu0 0
  %232 = vmatprep.subr.bf16.mxu0 0
  %233 = vmatpush1.bf16.msra.mxu0 0
  %234 = vmatprep.mubr.bf16.mxu0 0
  %235 = vmatmul.mubr.bf16.gmra.mrb[0].mxu0 %v104
  %v236 = vpop.f32.mrb[0].mxu0
  %v237 = vadd.f32 0.0, %v236
  %v238 = vpop.f32.mrb[0].mxu0
  %v239 = vadd.f32 0.0, %v238
  %v240 = vpop.f32.mrb[0].mxu0
  %v241 = vpop.f32.mrb[0].mxu0
  %242 = vdwg.mxu0
  %v243 = vld [vmem:[%s4] sm:$0xff]
  %v244 = vld [vmem:[%s4 + $0x8] sm:$0xff]
  %v245 = vld [vmem:[%s4 + $0x10] sm:$0xff]
  %v246 = vld [vmem:[%s4 + $0x18] sm:$0xff]
  %v247 = vld [vmem:[%s4 + $0x20] sm:$0xff]
  %v248 = vld [vmem:[%s4 + $0x28] sm:$0xff]
  %v249 = vld [vmem:[%s4 + $0x30] sm:$0xff]
  %v250 = vld [vmem:[%s4 + $0x38] sm:$0xff]
  %v251 = vld [vmem:[%s4 + $0x40] sm:$0xff]
  %v252 = vld [vmem:[%s4 + $0x48] sm:$0xff]
  %v253 = vld [vmem:[%s4 + $0x50] sm:$0xff]
  %v254 = vld [vmem:[%s4 + $0x58] sm:$0xff]
  %v255 = vld [vmem:[%s4 + $0x60] sm:$0xff]
  %v256 = vld [vmem:[%s4 + $0x68] sm:$0xff]
  %v257 = vld [vmem:[%s4 + $0x70] sm:$0xff]
  %v258 = vld [vmem:[%s4 + $0x78] sm:$0xff]
  %v275 = vunpack.c.l.b16 %v243
  %v276 = vunpack.c.h.b16 %v243
  %v277 = vunpack.c.l.b16 %v244
  %v278 = vunpack.c.h.b16 %v244
  %v279 = vunpack.c.l.b16 %v245
  %v280 = vunpack.c.h.b16 %v245
  %v281 = vunpack.c.l.b16 %v246
  %v282 = vunpack.c.h.b16 %v246
  %v283 = vunpack.c.l.b16 %v247
  %v284 = vunpack.c.h.b16 %v247
  %v285 = vunpack.c.l.b16 %v248
  %v286 = vunpack.c.h.b16 %v248
  %v287 = vunpack.c.l.b16 %v249
  %v288 = vunpack.c.h.b16 %v249
  %v289 = vunpack.c.l.b16 %v250
  %v290 = vunpack.c.h.b16 %v250
  %v291 = vunpack.c.l.b16 %v251
  %v292 = vunpack.c.h.b16 %v251
  %v293 = vunpack.c.l.b16 %v252
  %v294 = vunpack.c.h.b16 %v252
  %v295 = vunpack.c.l.b16 %v253
  %v296 = vunpack.c.h.b16 %v253
  %v297 = vunpack.c.l.b16 %v254
  %v298 = vunpack.c.h.b16 %v254
  %v299 = vunpack.c.l.b16 %v255
  %v300 = vunpack.c.h.b16 %v255
  %v301 = vunpack.c.l.b16 %v256
  %v302 = vunpack.c.h.b16 %v256
  %v303 = vunpack.c.l.b16 %v257
  %v304 = vunpack.c.h.b16 %v257
  %v305 = vunpack.c.l.b16 %v258
  %v306 = vunpack.c.h.b16 %v258
  %v307 = vpack.c.b16 %v277, %v275
  %v308 = vpack.c.b16 %v278, %v276
  %v309 = vpack.c.b16 %v281, %v279
  %v310 = vpack.c.b16 %v282, %v280
  %v311 = vpack.c.b16 %v285, %v283
  %v312 = vpack.c.b16 %v286, %v284
  %v313 = vpack.c.b16 %v289, %v287
  %v314 = vpack.c.b16 %v290, %v288
  %v315 = vpack.c.b16 %v293, %v291
  %v316 = vpack.c.b16 %v294, %v292
  %v317 = vpack.c.b16 %v297, %v295
  %v318 = vpack.c.b16 %v298, %v296
  %v319 = vpack.c.b16 %v301, %v299
  %v320 = vpack.c.b16 %v302, %v300
  %v321 = vpack.c.b16 %v305, %v303
  %v322 = vpack.c.b16 %v306, %v304
  %339 = vmatprep.subr.bf16.mxu0 %v308
  %340 = vmatpush1.bf16.msra.mxu0 %v307
  %341 = vmatprep.subr.bf16.mxu0 %v310
  %342 = vmatpush1.bf16.msra.mxu0 %v309
  %343 = vmatprep.subr.bf16.mxu0 %v312
  %344 = vmatpush1.bf16.msra.mxu0 %v311
  %345 = vmatprep.subr.bf16.mxu0 %v314
  %346 = vmatpush1.bf16.msra.mxu0 %v313
  %347 = vmatprep.subr.bf16.mxu0 %v316
  %348 = vmatpush1.bf16.msra.mxu0 %v315
  %349 = vmatprep.subr.bf16.mxu0 %v318
  %350 = vmatpush1.bf16.msra.mxu0 %v317
  %351 = vmatprep.subr.bf16.mxu0 %v320
  %352 = vmatpush1.bf16.msra.mxu0 %v319
  %353 = vmatprep.subr.bf16.mxu0 %v322
  %354 = vmatpush1.bf16.msra.mxu0 %v321
  %355 = vmatprep.subr.bf16.mxu0 0
  %356 = vmatpush1.bf16.msra.mxu0 0
  %357 = vmatprep.subr.bf16.mxu0 0
  %358 = vmatpush1.bf16.msra.mxu0 0
  %359 = vmatprep.subr.bf16.mxu0 0
  %360 = vmatpush1.bf16.msra.mxu0 0
  %361 = vmatprep.subr.bf16.mxu0 0
  %362 = vmatpush1.bf16.msra.mxu0 0
  %363 = vmatprep.subr.bf16.mxu0 0
  %364 = vmatpush1.bf16.msra.mxu0 0
  %365 = vmatprep.subr.bf16.mxu0 0
  %366 = vmatpush1.bf16.msra.mxu0 0
  %367 = vmatprep.subr.bf16.mxu0 0
  %368 = vmatpush1.bf16.msra.mxu0 0
  %369 = vmatprep.subr.bf16.mxu0 0
  %370 = vmatpush1.bf16.msra.mxu0 0
  %371 = vmatprep.mubr.bf16.mxu0 0
  %372 = vmatmul.mubr.bf16.gmra.mrb[0].mxu0 %v105
  %v373 = vpop.f32.mrb[0].mxu0
  %v374 = vadd.f32 0.0, %v373
  %v375 = vpop.f32.mrb[0].mxu0
  %v376 = vadd.f32 0.0, %v375
  %v377 = vpop.f32.mrb[0].mxu0
  %v378 = vpop.f32.mrb[0].mxu0
  %379 = vdwg.mxu0
  %v380 = vlaneseq
  %v381 = vshrl.u32 %v380, 7
  %v382 = vsub.s32 0, %v381
  %v383 = vrot.slane %v33, %v382
  %v384 = vlaneseq
  %v385 = vshrl.u32 %v384, 7
  %v386 = vsub.s32 0, %v385
  %v387 = vrot.slane %v34, %v386
  %v388 = vlaneseq
  %v389 = vshrl.u32 %v388, 7
  %v390 = vsub.s32 0, %v389
  %v391 = vrot.slane %v35, %v390
  %v392 = vlaneseq
  %v393 = vshrl.u32 %v392, 7
  %v394 = vsub.s32 0, %v393
  %v395 = vrot.slane %v36, %v394
  %v396 = vadd.f32 %v237, %v383
  %v397 = vadd.f32 %v239, %v387
  %v398 = vadd.f32 %v374, %v391
  %v399 = vadd.f32 %v376, %v395
  %vm400 = vcmask 1043456
  %v401 = vsel %vm400, %v396, 0.0
  %v402 = vrot.slane %v401, 4
  %v403 = vadd.f32 %v401, %v402
  %v404 = vrot.slane %v403, 2
  %v405 = vadd.f32 %v403, %v404
  %v406 = vrot.slane %v405, 1
  %v407 = vadd.f32 %v405, %v406
  %v408 = vsel %vm400, %v397, 0.0
  %v409 = vrot.slane %v408, 4
  %v410 = vadd.f32 %v408, %v409
  %v411 = vrot.slane %v410, 2
  %v412 = vadd.f32 %v410, %v411
  %v413 = vrot.slane %v412, 1
  %v414 = vadd.f32 %v412, %v413
  %v415 = vsel %vm400, %v398, 0.0
  %v416 = vrot.slane %v415, 4
  %v417 = vadd.f32 %v415, %v416
  %v418 = vrot.slane %v417, 2
  %v419 = vadd.f32 %v417, %v418
  %v420 = vrot.slane %v419, 1
  %v421 = vadd.f32 %v419, %v420
  %v422 = vsel %vm400, %v399, 0.0
  %v423 = vrot.slane %v422, 4
  %v424 = vadd.f32 %v422, %v423
  %v425 = vrot.slane %v424, 2
  %v426 = vadd.f32 %v424, %v425
  %v427 = vrot.slane %v426, 1
  %v428 = vadd.f32 %v426, %v427
  %v429 = vrcp.pop 4.0
  %v430 = vmul.f32 %v407, %v429
  %v431 = vmul.f32 %v414, %v429
  %v432 = vmul.f32 %v421, %v429
  %v433 = vmul.f32 %v428, %v429
  %v434 = vmul.f32 %v396, %v396
  %v435 = vmul.f32 %v397, %v397
  %v436 = vmul.f32 %v398, %v398
  %v437 = vmul.f32 %v399, %v399
  %v438 = vsel %vm400, %v434, 0.0
  %v439 = vrot.slane %v438, 4
  %v440 = vadd.f32 %v438, %v439
  %v441 = vrot.slane %v440, 2
  %v442 = vadd.f32 %v440, %v441
  %v443 = vrot.slane %v442, 1
  %v444 = vadd.f32 %v442, %v443
  %v445 = vsel %vm400, %v435, 0.0
  %v446 = vrot.slane %v445, 4
  %v447 = vadd.f32 %v445, %v446
  %v448 = vrot.slane %v447, 2
  %v449 = vadd.f32 %v447, %v448
  %v450 = vrot.slane %v449, 1
  %v451 = vadd.f32 %v449, %v450
  %v452 = vsel %vm400, %v436, 0.0
  %v453 = vrot.slane %v452, 4
  %v454 = vadd.f32 %v452, %v453
  %v455 = vrot.slane %v454, 2
  %v456 = vadd.f32 %v454, %v455
  %v457 = vrot.slane %v456, 1
  %v458 = vadd.f32 %v456, %v457
  %v459 = vsel %vm400, %v437, 0.0
  %v460 = vrot.slane %v459, 4
  %v461 = vadd.f32 %v459, %v460
  %v462 = vrot.slane %v461, 2
  %v463 = vadd.f32 %v461, %v462
  %v464 = vrot.slane %v463, 1
  %v465 = vadd.f32 %v463, %v464
  %v466 = vmul.f32 %v444, %v429
  %v467 = vmul.f32 %v451, %v429
  %v468 = vmul.f32 %v458, %v429
  %v469 = vmul.f32 %v465, %v429
  %v470 = vmul.f32 %v430, %v430
  %v471 = vmul.f32 %v431, %v431
  %v472 = vmul.f32 %v432, %v432
  %v473 = vmul.f32 %v433, %v433
  %v474 = vsub.f32 %v466, %v470
  %v475 = vsub.f32 %v467, %v471
  %v476 = vsub.f32 %v468, %v472
  %v477 = vsub.f32 %v469, %v473
  %v478 = vadd.f32 %v474, 0.8
  %v479 = vadd.f32 %v475, 0.8
  %v480 = vadd.f32 %v476, 0.8
  %v481 = vadd.f32 %v477, 0.8
  %v482 = vrsqrt.pop %v478
  %v483 = vrsqrt.pop %v479
  %v484 = vrsqrt.pop %v480
  %v485 = vrsqrt.pop %v481
  %v486 = vmul.f32 %v33, %v482
  %v487 = vmul.f32 %v34, %v483
  %v488 = vmul.f32 %v35, %v484
  %v489 = vmul.f32 %v36, %v485
  %v490 = vmul.f32 %v430, %v486
  %v491 = vmul.f32 %v431, %v487
  %v492 = vmul.f32 %v432, %v488
  %v493 = vmul.f32 %v433, %v489
  %v498 = vrot.slane %v490, 7
  %v499 = vrot.slane %v491, 7
  %v500 = vrot.slane %v492, 7
  %v501 = vrot.slane %v493, 7
  %v506 = vsub.f32 %v33, %v498
  %v507 = vsub.f32 %v34, %v499
  %v508 = vsub.f32 %v35, %v500
  %v509 = vsub.f32 %v36, %v501
  %v510 = vlaneseq
  %v511 = vshrl.u32 %v510, 7
  %v512 = vsub.s32 1, %v511
  %v513 = vrot.slane %v486, %v512
  %v514 = vlaneseq
  %v515 = vshrl.u32 %v514, 7
  %v516 = vsub.s32 1, %v515
  %v517 = vrot.slane %v487, %v516
  %v518 = vlaneseq
  %v519 = vshrl.u32 %v518, 7
  %v520 = vsub.s32 1, %v519
  %v521 = vrot.slane %v488, %v520
  %v522 = vlaneseq
  %v523 = vshrl.u32 %v522, 7
  %v524 = vsub.s32 1, %v523
  %v525 = vrot.slane %v489, %v524
  %v526 = vmul.f32 %v396, %v513
  %v527 = vmul.f32 %v397, %v517
  %v528 = vmul.f32 %v398, %v521
  %v529 = vmul.f32 %v399, %v525
  %v530 = vlaneseq
  %v531 = vshrl.u32 %v530, 7
  %v532 = vsub.s32 2, %v531
  %v533 = vrot.slane %v506, %v532
  %v534 = vlaneseq
  %v535 = vshrl.u32 %v534, 7
  %v536 = vsub.s32 2, %v535
  %v537 = vrot.slane %v507, %v536
  %v538 = vlaneseq
  %v539 = vshrl.u32 %v538, 7
  %v540 = vsub.s32 2, %v539
  %v541 = vrot.slane %v508, %v540
  %v542 = vlaneseq
  %v543 = vshrl.u32 %v542, 7
  %v544 = vsub.s32 2, %v543
  %v545 = vrot.slane %v509, %v544
  %v546 = vadd.f32 %v526, %v533
  %v547 = vadd.f32 %v527, %v537
  %v548 = vadd.f32 %v528, %v541
  %v549 = vadd.f32 %v529, %v545
  %vm550 = vcmp.ge.f32.partialorder %v546, 0.0
  %vm551 = vcmp.ge.f32.partialorder %v547, 0.0
  %vm552 = vcmp.ge.f32.partialorder %v548, 0.0
  %vm553 = vcmp.ge.f32.partialorder %v549, 0.0
  %v554 = vmul.f32 %v546, 0.2
  %v555 = vmul.f32 %v547, 0.2
  %v556 = vmul.f32 %v548, 0.2
  %v557 = vmul.f32 %v549, 0.2
  %v558 = vsel %vm550, %v546, %v554
  %v559 = vsel %vm551, %v547, %v555
  %v560 = vsel %vm552, %v548, %v556
  %v561 = vsel %vm553, %v549, %v557
  %v562 = vpack.c.bf16 %v558, %v558
  %v563 = vpack.c.bf16 %v559, %v559
  %v564 = vpack.c.bf16 %v560, %v560
  %v565 = vpack.c.bf16 %v561, %v561
  %v566 = vld [vmem:[%s5] sm:$0xf]
  %v567 = vld [vmem:[%s5 + $0x4] sm:$0xf]
  %v568 = vld [vmem:[%s5 + $0x8] sm:$0xf]
  %v569 = vld [vmem:[%s5 + $0xc] sm:$0xf]
  %v570 = vld [vmem:[%s5 + $0x10] sm:$0xf]
  %v571 = vld [vmem:[%s5 + $0x14] sm:$0xf]
  %v572 = vld [vmem:[%s5 + $0x18] sm:$0xf]
  %v573 = vld [vmem:[%s5 + $0x1c] sm:$0xf]
  %v574 = vld [vmem:[%s5 + $0x20] sm:$0xf]
  %v575 = vld [vmem:[%s5 + $0x24] sm:$0xf]
  %v576 = vld [vmem:[%s5 + $0x28] sm:$0xf]
  %v577 = vld [vmem:[%s5 + $0x2c] sm:$0xf]
  %v578 = vld [vmem:[%s5 + $0x30] sm:$0xf]
  %v579 = vld [vmem:[%s5 + $0x34] sm:$0xf]
  %v580 = vld [vmem:[%s5 + $0x38] sm:$0xf]
  %v581 = vld [vmem:[%s5 + $0x3c] sm:$0xf]
  %v582 = vld [vmem:[%s5 + $0x40] sm:$0xf]
  %v583 = vld [vmem:[%s5 + $0x44] sm:$0xf]
  %v584 = vld [vmem:[%s5 + $0x48] sm:$0xf]
  %v585 = vld [vmem:[%s5 + $0x4c] sm:$0xf]
  %v586 = vld [vmem:[%s5 + $0x50] sm:$0xf]
  %v587 = vld [vmem:[%s5 + $0x54] sm:$0xf]
  %v588 = vld [vmem:[%s5 + $0x58] sm:$0xf]
  %v589 = vld [vmem:[%s5 + $0x5c] sm:$0xf]
  %v590 = vld [vmem:[%s5 + $0x60] sm:$0xf]
  %v591 = vld [vmem:[%s5 + $0x64] sm:$0xf]
  %v592 = vld [vmem:[%s5 + $0x68] sm:$0xf]
  %v593 = vld [vmem:[%s5 + $0x6c] sm:$0xf]
  %v594 = vld [vmem:[%s5 + $0x70] sm:$0xf]
  %v595 = vld [vmem:[%s5 + $0x74] sm:$0xf]
  %v596 = vld [vmem:[%s5 + $0x78] sm:$0xf]
  %v597 = vld [vmem:[%s5 + $0x7c] sm:$0xf]
  %v598 = vlaneseq
  %v599 = vshrl.u32 %v598, 7
  %v600 = vsub.s32 3, %v599
  %v601 = vrot.slane %v33, %v600
  %v634 = vunpack.c.l.b16 %v566
  %v635 = vunpack.c.l.b16 %v567
  %v636 = vunpack.c.l.b16 %v568
  %v637 = vunpack.c.l.b16 %v569
  %v638 = vunpack.c.l.b16 %v570
  %v639 = vunpack.c.l.b16 %v571
  %v640 = vunpack.c.l.b16 %v572
  %v641 = vunpack.c.l.b16 %v573
  %v642 = vunpack.c.l.b16 %v574
  %v643 = vunpack.c.l.b16 %v575
  %v644 = vunpack.c.l.b16 %v576
  %v645 = vunpack.c.l.b16 %v577
  %v646 = vunpack.c.l.b16 %v578
  %v647 = vunpack.c.l.b16 %v579
  %v648 = vunpack.c.l.b16 %v580
  %v649 = vunpack.c.l.b16 %v581
  %v650 = vunpack.c.l.b16 %v582
  %v651 = vunpack.c.l.b16 %v583
  %v652 = vunpack.c.l.b16 %v584
  %v653 = vunpack.c.l.b16 %v585
  %v654 = vunpack.c.l.b16 %v586
  %v655 = vunpack.c.l.b16 %v587
  %v656 = vunpack.c.l.b16 %v588
  %v657 = vunpack.c.l.b16 %v589
  %v658 = vunpack.c.l.b16 %v590
  %v659 = vunpack.c.l.b16 %v591
  %v660 = vunpack.c.l.b16 %v592
  %v661 = vunpack.c.l.b16 %v593
  %v662 = vunpack.c.l.b16 %v594
  %v663 = vunpack.c.l.b16 %v595
  %v664 = vunpack.c.l.b16 %v596
  %v665 = vunpack.c.l.b16 %v597
  %v666 = vpack.c.b16 %v635, %v634
  %v667 = vpack.c.b16 %v637, %v636
  %v668 = vpack.c.b16 %v639, %v638
  %v669 = vpack.c.b16 %v641, %v640
  %v670 = vpack.c.b16 %v643, %v642
  %v671 = vpack.c.b16 %v645, %v644
  %v672 = vpack.c.b16 %v647, %v646
  %v673 = vpack.c.b16 %v649, %v648
  %v674 = vpack.c.b16 %v651, %v650
  %v675 = vpack.c.b16 %v653, %v652
  %v676 = vpack.c.b16 %v655, %v654
  %v677 = vpack.c.b16 %v657, %v656
  %v678 = vpack.c.b16 %v659, %v658
  %v679 = vpack.c.b16 %v661, %v660
  %v680 = vpack.c.b16 %v663, %v662
  %v681 = vpack.c.b16 %v665, %v664
  %698 = vmatprep.subr.bf16.mxu0 0
  %699 = vmatpush1.bf16.msra.mxu0 %v666
  %700 = vmatprep.subr.bf16.mxu0 0
  %701 = vmatpush1.bf16.msra.mxu0 %v667
  %702 = vmatprep.subr.bf16.mxu0 0
  %703 = vmatpush1.bf16.msra.mxu0 %v668
  %704 = vmatprep.subr.bf16.mxu0 0
  %705 = vmatpush1.bf16.msra.mxu0 %v669
  %706 = vmatprep.subr.bf16.mxu0 0
  %707 = vmatpush1.bf16.msra.mxu0 %v670
  %708 = vmatprep.subr.bf16.mxu0 0
  %709 = vmatpush1.bf16.msra.mxu0 %v671
  %710 = vmatprep.subr.bf16.mxu0 0
  %711 = vmatpush1.bf16.msra.mxu0 %v672
  %712 = vmatprep.subr.bf16.mxu0 0
  %713 = vmatpush1.bf16.msra.mxu0 %v673
  %714 = vmatprep.subr.bf16.mxu0 0
  %715 = vmatpush1.bf16.msra.mxu0 %v674
  %716 = vmatprep.subr.bf16.mxu0 0
  %717 = vmatpush1.bf16.msra.mxu0 %v675
  %718 = vmatprep.subr.bf16.mxu0 0
  %719 = vmatpush1.bf16.msra.mxu0 %v676
  %720 = vmatprep.subr.bf16.mxu0 0
  %721 = vmatpush1.bf16.msra.mxu0 %v677
  %722 = vmatprep.subr.bf16.mxu0 0
  %723 = vmatpush1.bf16.msra.mxu0 %v678
  %724 = vmatprep.subr.bf16.mxu0 0
  %725 = vmatpush1.bf16.msra.mxu0 %v679
  %726 = vmatprep.subr.bf16.mxu0 0
  %727 = vmatpush1.bf16.msra.mxu0 %v680
  %728 = vmatprep.subr.bf16.mxu0 0
  %729 = vmatpush1.bf16.msra.mxu0 %v681
  %730 = vmatprep.mubr.bf16.mxu0 %v563
  %731 = vmatmul.mubr.bf16.gmra.mrb[0].mxu0 %v562
  %v732 = vpop.f32.mrb[0].mxu0
  %v733 = vadd.f32 %v601, %v732
  %v734 = vpop.f32.mrb[0].mxu0
  %v735 = vpop.f32.mrb[0].mxu0
  %v736 = vpop.f32.mrb[0].mxu0
  %737 = vdwg.mxu0
  %v738 = vld [vmem:[%s6] sm:$0xf]
  %v739 = vld [vmem:[%s6 + $0x4] sm:$0xf]
  %v740 = vld [vmem:[%s6 + $0x8] sm:$0xf]
  %v741 = vld [vmem:[%s6 + $0xc] sm:$0xf]
  %v742 = vld [vmem:[%s6 + $0x10] sm:$0xf]
  %v743 = vld [vmem:[%s6 + $0x14] sm:$0xf]
  %v744 = vld [vmem:[%s6 + $0x18] sm:$0xf]
  %v745 = vld [vmem:[%s6 + $0x1c] sm:$0xf]
  %v746 = vld [vmem:[%s6 + $0x20] sm:$0xf]
  %v747 = vld [vmem:[%s6 + $0x24] sm:$0xf]
  %v748 = vld [vmem:[%s6 + $0x28] sm:$0xf]
  %v749 = vld [vmem:[%s6 + $0x2c] sm:$0xf]
  %v750 = vld [vmem:[%s6 + $0x30] sm:$0xf]
  %v751 = vld [vmem:[%s6 + $0x34] sm:$0xf]
  %v752 = vld [vmem:[%s6 + $0x38] sm:$0xf]
  %v753 = vld [vmem:[%s6 + $0x3c] sm:$0xf]
  %v754 = vld [vmem:[%s6 + $0x40] sm:$0xf]
  %v755 = vld [vmem:[%s6 + $0x44] sm:$0xf]
  %v756 = vld [vmem:[%s6 + $0x48] sm:$0xf]
  %v757 = vld [vmem:[%s6 + $0x4c] sm:$0xf]
  %v758 = vld [vmem:[%s6 + $0x50] sm:$0xf]
  %v759 = vld [vmem:[%s6 + $0x54] sm:$0xf]
  %v760 = vld [vmem:[%s6 + $0x58] sm:$0xf]
  %v761 = vld [vmem:[%s6 + $0x5c] sm:$0xf]
  %v762 = vld [vmem:[%s6 + $0x60] sm:$0xf]
  %v763 = vld [vmem:[%s6 + $0x64] sm:$0xf]
  %v764 = vld [vmem:[%s6 + $0x68] sm:$0xf]
  %v765 = vld [vmem:[%s6 + $0x6c] sm:$0xf]
  %v766 = vld [vmem:[%s6 + $0x70] sm:$0xf]
  %v767 = vld [vmem:[%s6 + $0x74] sm:$0xf]
  %v768 = vld [vmem:[%s6 + $0x78] sm:$0xf]
  %v769 = vld [vmem:[%s6 + $0x7c] sm:$0xf]
  %v770 = vlaneseq
  %v771 = vshrl.u32 %v770, 7
  %v772 = vsub.s32 4, %v771
  %v773 = vrot.slane %v33, %v772
  %v806 = vunpack.c.l.b16 %v738
  %v807 = vunpack.c.l.b16 %v739
  %v808 = vunpack.c.l.b16 %v740
  %v809 = vunpack.c.l.b16 %v741
  %v810 = vunpack.c.l.b16 %v742
  %v811 = vunpack.c.l.b16 %v743
  %v812 = vunpack.c.l.b16 %v744
  %v813 = vunpack.c.l.b16 %v745
  %v814 = vunpack.c.l.b16 %v746
  %v815 = vunpack.c.l.b16 %v747
  %v816 = vunpack.c.l.b16 %v748
  %v817 = vunpack.c.l.b16 %v749
  %v818 = vunpack.c.l.b16 %v750
  %v819 = vunpack.c.l.b16 %v751
  %v820 = vunpack.c.l.b16 %v752
  %v821 = vunpack.c.l.b16 %v753
  %v822 = vunpack.c.l.b16 %v754
  %v823 = vunpack.c.l.b16 %v755
  %v824 = vunpack.c.l.b16 %v756
  %v825 = vunpack.c.l.b16 %v757
  %v826 = vunpack.c.l.b16 %v758
  %v827 = vunpack.c.l.b16 %v759
  %v828 = vunpack.c.l.b16 %v760
  %v829 = vunpack.c.l.b16 %v761
  %v830 = vunpack.c.l.b16 %v762
  %v831 = vunpack.c.l.b16 %v763
  %v832 = vunpack.c.l.b16 %v764
  %v833 = vunpack.c.l.b16 %v765
  %v834 = vunpack.c.l.b16 %v766
  %v835 = vunpack.c.l.b16 %v767
  %v836 = vunpack.c.l.b16 %v768
  %v837 = vunpack.c.l.b16 %v769
  %v838 = vpack.c.b16 %v807, %v806
  %v839 = vpack.c.b16 %v809, %v808
  %v840 = vpack.c.b16 %v811, %v810
  %v841 = vpack.c.b16 %v813, %v812
  %v842 = vpack.c.b16 %v815, %v814
  %v843 = vpack.c.b16 %v817, %v816
  %v844 = vpack.c.b16 %v819, %v818
  %v845 = vpack.c.b16 %v821, %v820
  %v846 = vpack.c.b16 %v823, %v822
  %v847 = vpack.c.b16 %v825, %v824
  %v848 = vpack.c.b16 %v827, %v826
  %v849 = vpack.c.b16 %v829, %v828
  %v850 = vpack.c.b16 %v831, %v830
  %v851 = vpack.c.b16 %v833, %v832
  %v852 = vpack.c.b16 %v835, %v834
  %v853 = vpack.c.b16 %v837, %v836
  %870 = vmatprep.subr.bf16.mxu0 0
  %871 = vmatpush1.bf16.msra.mxu0 %v838
  %872 = vmatprep.subr.bf16.mxu0 0
  %873 = vmatpush1.bf16.msra.mxu0 %v839
  %874 = vmatprep.subr.bf16.mxu0 0
  %875 = vmatpush1.bf16.msra.mxu0 %v840
  %876 = vmatprep.subr.bf16.mxu0 0
  %877 = vmatpush1.bf16.msra.mxu0 %v841
  %878 = vmatprep.subr.bf16.mxu0 0
  %879 = vmatpush1.bf16.msra.mxu0 %v842
  %880 = vmatprep.subr.bf16.mxu0 0
  %881 = vmatpush1.bf16.msra.mxu0 %v843
  %882 = vmatprep.subr.bf16.mxu0 0
  %883 = vmatpush1.bf16.msra.mxu0 %v844
  %884 = vmatprep.subr.bf16.mxu0 0
  %885 = vmatpush1.bf16.msra.mxu0 %v845
  %886 = vmatprep.subr.bf16.mxu0 0
  %887 = vmatpush1.bf16.msra.mxu0 %v846
  %888 = vmatprep.subr.bf16.mxu0 0
  %889 = vmatpush1.bf16.msra.mxu0 %v847
  %890 = vmatprep.subr.bf16.mxu0 0
  %891 = vmatpush1.bf16.msra.mxu0 %v848
  %892 = vmatprep.subr.bf16.mxu0 0
  %893 = vmatpush1.bf16.msra.mxu0 %v849
  %894 = vmatprep.subr.bf16.mxu0 0
  %895 = vmatpush1.bf16.msra.mxu0 %v850
  %896 = vmatprep.subr.bf16.mxu0 0
  %897 = vmatpush1.bf16.msra.mxu0 %v851
  %898 = vmatprep.subr.bf16.mxu0 0
  %899 = vmatpush1.bf16.msra.mxu0 %v852
  %900 = vmatprep.subr.bf16.mxu0 0
  %901 = vmatpush1.bf16.msra.mxu0 %v853
  %902 = vmatprep.mubr.bf16.mxu0 %v565
  %903 = vmatmul.mubr.bf16.gmra.mrb[0].mxu0 %v564
  %v904 = vpop.f32.mrb[0].mxu0
  %v905 = vadd.f32 %v773, %v904
  %v906 = vpop.f32.mrb[0].mxu0
  %v907 = vpop.f32.mrb[0].mxu0
  %v908 = vpop.f32.mrb[0].mxu0
  %909 = vdwg.mxu0
  %vm910 = vcmask 519168
  %911 = vst.msk [vmem:[%s8] sm:$0xf] %vm910, %v733
  %v912 = vxor.u32 %v905, 2147483648
  %v913 = vmul.f32 %v912, 1.442695
  %v914 = vpow.pop %v913
  %v915 = vadd.f32 %v914, 1.0
  %v916 = vrcp.pop %v915
  %v917 = vmul.f32 1.0, %v916
  %vm918 = vcmask 257024
  %919 = vst.msk [vmem:[%s9] sm:$0xf] %vm918, %v917
  // Predicated region
  $region34: #{generator_forward.1} parent=0 // pred_check
    _
  $region35: #{generator_forward.1} parent=0 // pred_check_branch
    %921 = sbr.rel (0) target = $region37
  $region36: #{generator_forward.1} parent=0 // pred_region
    _
  $region37: #{generator_forward.1} parent=0 // pred_fallthru
    _
  // Predicated region
  $region38: #{generator_forward.1} parent=0 // pred_check
    _
  $region39: #{generator_forward.1} parent=0 // pred_check_branch
    %923 = sbr.rel (0) target = $region41
  $region40: #{generator_forward.1} parent=0 // pred_region
    _
  $region41: #{generator_forward.1} parent=0 // pred_fallthru
    _
  // Predicated region
  $region42: #{generator_forward.1} parent=0 // pred_check
    _
  $region43: #{generator_forward.1} parent=0 // pred_check_branch
    %925 = sbr.rel (0) target = $region45
  $region44: #{generator_forward.1} parent=0 // pred_region
    _
  $region45: #{generator_forward.1} parent=0 // pred_fallthru
    _
  // Predicated region
  $region46: #{generator_forward.1} parent=0 // pred_check
    _
  $region47: #{generator_forward.1} parent=0 // pred_check_branch
    %927 = sbr.rel (0) target = $region49
  $region48: #{generator_forward.1} parent=0 // pred_region
    _
  $region49: #{generator_forward.1} parent=0 // pred_fallthru
    _

</llo_original>
